<compile_context>
chip_gen: v5e
topology: v5e:2x2
jax: 0.10.0
libtpu: 0.0.40
codegen_flags: <defaults>
</compile_context>

<pallas_src>
import numpy as np
import jax
import jax.numpy as jnp
from jax.experimental import pallas as pl
from jax.experimental.pallas import tpu as pltpu


# ----------------------------------------------------------------------------
# Kernel: one one-hot matmul, MXU result written directly to the output block.
# ----------------------------------------------------------------------------
def _expand_kernel(x_ref, e_ref, o_ref):
    """o = x @ E where E is a {0,1} one-hot expansion matrix (exact copy).

    TODO(synk): a non-finite element elsewhere in a row contributes 0*inf=NaN
    through the matmul; true gather semantics would need a copy/gather path.
    """
    o_ref[...] = jnp.dot(x_ref[...], e_ref[...],
                         preferred_element_type=o_ref.dtype)


# ----------------------------------------------------------------------------
# Helpers
# ----------------------------------------------------------------------------
def _vmem_limit_bytes():
    cap = 128 << 20
    try:
        cap = int(pltpu.get_tpu_info().vmem_capacity_bytes)
    except Exception:
        pass
    # <=48 MiB on v7x (64 MiB physical), 64 MiB on v5e/v6e (128 MiB physical).
    return min(64 << 20, (cap * 3) // 4)


def _choose_row_tile(rows, in_w, out_w, itemsize, vmem_limit):
    """Multiple-of-8 row tile sized against an explicit VMEM budget."""
    if rows <= 8:
        return rows
    per_row = (2 * out_w + 2 * in_w) * itemsize      # double-buffered out + in
    e_bytes = 2 * in_w * out_w * itemsize            # E + its pipeline buffer
    budget = max(int(vmem_limit * 0.6) - e_bytes, 8 * per_row)
    cap = budget // per_row
    # ~10 MiB of real output bytes per block amortizes the ~0.35us step cost.
    cap = min(cap, max(8, (10 << 20) // max(out_w * itemsize, 1)))
    # Keep multiple steps on the 'parallel' row axis (>=4 preferred so both
    # v7x TensorCores get >=2 pipelined steps each).
    if rows >= 32:
        cap = min(cap, rows // 4)
    elif rows >= 16:
        cap = min(cap, rows // 2)
    cap = min(cap, rows)
    return max(8, (cap // 8) * 8)


def _wrep_matrix(tw, s, dtype):
    """E of shape (tw, tw*s): E[w, t] = (w == t // s)  (W-repeat only)."""
    e = np.arange(tw)[:, None] == (np.arange(tw * s)[None, :] // s)
    return jnp.asarray(e, dtype=dtype)


def _folded_matrix(W, s, k, dtype):
    """Block-diagonal E of shape (k*W, k*s*W*s) folding both the H-repeat and
    k input rows per kernel row:
        E[i*W + w, i*s*W*s + j*W*s + wo] = (w == wo // s)."""
    rows = np.arange(k * W)
    cols = np.arange(k * s * W * s)
    row_i, row_w = rows // W, rows % W
    col_i, col_wo = cols // (s * W * s), cols % (W * s)
    e = (row_i[:, None] == col_i[None, :]) & (row_w[:, None] == col_wo[None, :] // s)
    return jnp.asarray(e, dtype=dtype)


# ----------------------------------------------------------------------------
# Core NCHW upsample
# ----------------------------------------------------------------------------
def _upsample_nchw(x, s):
    N, C, H, W = x.shape
    R = N * C * H
    sws = s * W * s
    dtype = x.dtype
    itemsize = jnp.dtype(dtype).itemsize
    vmem_limit = _vmem_limit_bytes()

    # --- pick a column tile for the W-blocked path (needs lane-dense blocks) --
    tw = None
    if sws >= 128:
        if W <= 512 and (W * s) % 128 == 0:
            tw = W
        else:
            for cand in (512, 384, 256, 128):
                if W % cand == 0:
                    tw = cand
                    break
            else:
                if (W * s) % 128 == 0:
                    tw = W

    if tw is not None:
        # ---- Path B: W-blocked repeat (tiny diagonal E, lane-dense stores) ---
        nwb = W // tw
        x2 = x.reshape(R, W)
        E = _wrep_matrix(tw, s, dtype)
        tr = _choose_row_tile(R, tw, tw * s, itemsize, vmem_limit)
        out2 = pl.pallas_call(
            _expand_kernel,
            out_shape=jax.ShapeDtypeStruct((R, sws), dtype),
            grid=(pl.cdiv(R, tr), nwb, s),
            in_specs=[
                # x block constant across the innermost j axis -> no re-DMA.
                pl.BlockSpec((tr, tw), lambda r, wb, j: (r, wb)),
                # Constant index_map: E is DMA'd once and stays VMEM-resident.
                pl.BlockSpec((tw, tw * s), lambda r, wb, j: (0, 0)),
            ],
            out_specs=pl.BlockSpec((tr, tw * s),
                                   lambda r, wb, j: (r, j * nwb + wb)),
            compiler_params=pltpu.CompilerParams(
                dimension_semantics=("parallel", "arbitrary", "arbitrary"),
                vmem_limit_bytes=vmem_limit,
            ),
            cost_estimate=pl.CostEstimate(
                flops=2 * R * sws * tw,
                transcendentals=0,
                bytes_accessed=int(x.size * itemsize * (1 + s * s)
                                   + E.size * itemsize),
            ),
        )(x2, E)
    else:
        # ---- Path A: folded single-matmul (small / awkward W) ----------------
        k = 1
        if sws < 128:
            k_min = -(-128 // sws)  # ceil(128 / sws)
            for cand in range(k_min, min(R, 8 * k_min) + 1):
                if R % cand == 0:
                    k = cand
                    break
        rows, in_w, out_w = R // k, k * W, k * sws
        x2 = x.reshape(rows, in_w)
        E = _folded_matrix(W, s, k, dtype)
        tr = _choose_row_tile(rows, in_w, out_w, itemsize, vmem_limit)

        est = 2 * E.size * itemsize + tr * (2 * in_w + 2 * out_w) * itemsize
        if est > vmem_limit:
            # TODO(synk): block the W axis (diagonal E sub-blocks) for very wide
            # feature maps where the dense expansion matrix no longer fits VMEM.
            raise NotImplementedError(
                f"interpolate_nearest: W={W}, s={s} needs a W-blocked expansion "
                f"matrix (estimated VMEM {est >> 20} MiB > {vmem_limit >> 20} MiB)")

        out2 = pl.pallas_call(
            _expand_kernel,
            out_shape=jax.ShapeDtypeStruct((rows, out_w), dtype),
            grid=(pl.cdiv(rows, tr),),
            in_specs=[
                pl.BlockSpec((tr, in_w), lambda r: (r, 0)),
                # Constant index_map: E is DMA'd once and stays VMEM-resident.
                pl.BlockSpec((in_w, out_w), lambda r: (0, 0)),
            ],
            out_specs=pl.BlockSpec((tr, out_w), lambda r: (r, 0)),
            compiler_params=pltpu.CompilerParams(
                dimension_semantics=("parallel",),
                vmem_limit_bytes=vmem_limit,
            ),
            cost_estimate=pl.CostEstimate(
                flops=2 * rows * in_w * out_w,
                transcendentals=0,
                bytes_accessed=int(x.size * itemsize * (1 + s * s)
                                   + E.size * itemsize),
            ),
        )(x2, E)

    # (rows, cols) is row-major identical to (N, C, H*s, W*s): free reshape.
    return out2.reshape(N, C, H * s, W * s)


# ----------------------------------------------------------------------------
# Wrapper (mirrors the PyTorch module's forward)
# ----------------------------------------------------------------------------
def interpolate_nearest(x, scale_factor, data_format="NCHW"):
    """Nearest-neighbor upsample by an integer scale factor.

    x: (N, C, H, W) if data_format == 'NCHW', else (N, H, W, C).
    Returns the upsampled tensor in the same data_format.
    """
    s = int(scale_factor)
    if s != scale_factor or s < 1:
        # TODO(synk): non-integer scale factors / arbitrary output sizes need a
        # per-output-column gather matrix instead of the regular s-fold expansion.
        raise ValueError("integer scale_factor only")
    if not jnp.issubdtype(x.dtype, jnp.floating):
        # TODO(synk): integer/uint8 inputs need a copy/gather path (v7x MXU has
        # no integer support), not the one-hot matmul.
        raise NotImplementedError("floating dtypes only")

    if data_format == "NHWC":
        # TODO(synk): a native NHWC kernel (C on the lane axis) would avoid
        # these two extra HBM round trips; channels_first is the module default.
        x = jnp.transpose(x, (0, 3, 1, 2))

    out = x if s == 1 else _upsample_nchw(x, s)

    if data_format == "NHWC":
        out = jnp.transpose(out, (0, 2, 3, 1))
    return out


def make_interpolate(scale_factor, input_size, name="interp", data_format="NCHW"):
    """Mirror of the PyTorch module's constructor; returns the forward fn."""
    del input_size, name  # output size is derived from the runtime input shape

    def forward(x):
        return interpolate_nearest(x, scale_factor, data_format)

    return forward


# ----------------------------------------------------------------------------
if __name__ == "__main__":
    key = jax.random.PRNGKey(0)
    fn = jax.jit(interpolate_nearest, static_argnums=(1, 2))

    # 1) Module-default channels_first path (folded small-W kernel, k=2).
    N, C, H, W, s = 2, 4, 16, 16, 2
    x = jax.random.normal(key, (N, C, H, W), jnp.float32)
    # Snap values onto the bf16 grid so the exactness check is immune to the
    # MXU's internal pass decomposition for f32 one-hot matmuls.
    x = x.astype(jnp.bfloat16).astype(jnp.float32)

    out = jax.block_until_ready(fn(x, s, "NCHW"))
    ref = jnp.repeat(jnp.repeat(x, s, axis=2), s, axis=3)
    assert out.shape == (N, C, H * s, W * s) and out.dtype == x.dtype
    np.testing.assert_allclose(np.asarray(out), np.asarray(ref),
                               rtol=1e-6, atol=1e-6)

    # 2) channels_last path (wrapper transposes around the same kernel).
    x_nhwc = jnp.transpose(x, (0, 2, 3, 1))
    out_nhwc = jax.block_until_ready(fn(x_nhwc, s, "NHWC"))
    np.testing.assert_allclose(np.asarray(out_nhwc),
                               np.asarray(jnp.transpose(ref, (0, 2, 3, 1))),
                               rtol=1e-6, atol=1e-6)

    # 3) Wider feature map -> W-blocked path (lane-dense 128-wide stores).
    x3 = jax.random.normal(jax.random.PRNGKey(1), (1, 2, 8, 64), jnp.float32)
    x3 = x3.astype(jnp.bfloat16).astype(jnp.float32)
    out3 = jax.block_until_ready(fn(x3, s, "NCHW"))
    ref3 = jnp.repeat(jnp.repeat(x3, s, axis=2), s, axis=3)
    np.testing.assert_allclose(np.asarray(out3), np.asarray(ref3),
                               rtol=1e-6, atol=1e-6)

    # 4) bf16 input: matmul accumulates in the output dtype, copy is exact.
    xb = x.astype(jnp.bfloat16)
    outb = jax.block_until_ready(fn(xb, s, "NCHW"))
    refb = jnp.repeat(jnp.repeat(xb, s, axis=2), s, axis=3)
    np.testing.assert_array_equal(np.asarray(outb.astype(jnp.float32)),
                                  np.asarray(refb.astype(jnp.float32)))

    print("KERNEL_OK")
</pallas_src>

<mosaic_0001>
module attributes {stable_mosaic.version = 11 : i64} {
  func.func @_expand_kernel(%arg0: i32, %arg1: memref<16x32xf32, #tpu.memory_space<vmem>>, %arg2: memref<32x128xf32, #tpu.memory_space<vmem>>, %arg3: memref<16x128xf32, #tpu.memory_space<vmem>>) attributes {dimension_semantics = [#tpu.dimension_semantics<parallel>], iteration_bounds = array<i64: 4>, scalar_prefetch = 0 : i64, scratch_operands = 0 : i64, tpu.core_type = #tpu.core_type<tc>, window_params = [{transform_indices = @transform_0, window_bounds = array<i64: 16, 32>}, {pipeline_mode = #tpu.pipeline_mode<synchronous>, transform_indices = @transform_1, window_bounds = array<i64: 32, 128>}, {transform_indices = @transform_2, window_bounds = array<i64: 16, 128>}]} {
    %c0 = arith.constant 0 : index
    %c0_0 = arith.constant 0 : index
    %0 = vector.load %arg1[%c0, %c0_0] : memref<16x32xf32, #tpu.memory_space<vmem>>, vector<16x32xf32>
    %c0_1 = arith.constant 0 : index
    %c0_2 = arith.constant 0 : index
    %1 = vector.load %arg2[%c0_1, %c0_2] : memref<32x128xf32, #tpu.memory_space<vmem>>, vector<32x128xf32>
    %cst = arith.constant dense<0.000000e+00> : vector<16x128xf32>
    %2 = tpu.matmul %0, %1, %cst {dimension_numbers = #tpu.dot_dimension_numbers<[1], [0], [0], [1], [0, 0, 1, 1], [], []>} : vector<16x32xf32>, vector<32x128xf32>, vector<16x128xf32> -> vector<16x128xf32>
    %c0_3 = arith.constant 0 : index
    %c0_4 = arith.constant 0 : index
    %3 = vector.load %arg3[%c0_3, %c0_4] : memref<16x128xf32, #tpu.memory_space<vmem>>, vector<16x128xf32>
    tpu.vector_store %arg3[%c0_3, %c0_4], %2 {strides = array<i32>} : memref<16x128xf32, #tpu.memory_space<vmem>>, vector<16x128xf32>,
    return
  }
  func.func @transform_0(%arg0: i32) -> (i32, i32) {
    %c0_i32 = arith.constant 0 : i32
    %c0_i32_0 = arith.constant 0 : i32
    return %arg0, %c0_i32 : i32, i32
  }
  func.func @transform_1(%arg0: i32) -> (i32, i32) {
    %c0_i32 = arith.constant 0 : i32
    %c0_i32_0 = arith.constant 0 : i32
    %c0_i32_1 = arith.constant 0 : i32
    return %c0_i32, %c0_i32_0 : i32, i32
  }
  func.func @transform_2(%arg0: i32) -> (i32, i32) {
    %c0_i32 = arith.constant 0 : i32
    %c0_i32_0 = arith.constant 0 : i32
    return %arg0, %c0_i32 : i32, i32
  }
}

</mosaic_0001>

<llo_original>
// kernel: interpolate_nearest.1
$region0: #{interpolate_nearest.1}
  #allocation0 [shape = 'u32[]', space=smem, size = 0x4, offset = 0x4, fixed_abs, tag = 'smem constant byte address 0x4 - core index']
  #allocation1 [shape = 'u32[72,128]{1,0:T(1,128)}', space=vmem, size = 0x9000, scoped, tag = 'internal scratch']
  %s0 = inlined_call_operand.vmem [shape: f32[64,32], index: 0, kind: input, shape index: {}]
  %s1 = inlined_call_operand.vmem [shape: f32[32,128], index: 1, kind: input, shape index: {}]
  %s2 = inlined_call_operand.vmem [shape: f32[64,128], index: 2, kind: output, shape index: {}]
  %s3 = sld [smem:[#allocation0]]
  $region41: #{interpolate_nearest.1} parent=0
    _
  %s5 = ssub.s32 1, %s3
  %s6 = scalar_select 0, %s5, %s3
  loop: start=0, step=1, limit=6
  $region2: #{interpolate_nearest.1} parent=0 // loop_pre_header
    _
  $region3: #{interpolate_nearest.1} parent=0 // loop_header
    %s8 = sphi 0, %s12
    %p9 = scmp.ge.s32.totalorder %s8, 6
    %s18 = sphi 0, %s20
    %s21 = sphi 0, %s18
    %s22 = sphi 0, %s21
    %s38 = sphi 0, %s22
    %s42 = sphi 0, %s42
    %s44 = sphi 0, %s42
    %s45 = sphi 0, %s44
    %s59 = sphi 0, %s45
    %s65 = sphi 0, %s67
    %s68 = sphi 0, %s65
    %s69 = sphi 0, %s68
    %s85 = sphi 0, %s69
  $region4: #{interpolate_nearest.1} parent=0 // loop_header_branch
    %11 = sbr.rel (%p9) target = $region8
  $region5: #{interpolate_nearest.1} parent=0 // loop_body
    %s13 = ssub.s32 %s8, 1
    %s14 = ssub.s32 %s8, 2
    %s15 = sadd.s32 %s8, 1
    %s16 = ssub.s32 %s8, %s15
    %p17 = scmp.eq.s32.totalorder %s16, 0
    %s19 = sadd.s32 %s18, 1
    %s20 = scalar_select %p17, %s18, %s19
    %p23 = pneg %p17
    %p24 = scmp.eq.s32.totalorder %s8, 3
    %p25 = por %p23, %p24
    %p26 = scmp.ne.s32.totalorder %s18, %s21
    %p27 = scmp.eq.s32.totalorder %s8, 0
    %p28 = por %p26, %p27
    %p29 = scmp.ne.s32.totalorder %s18, %s21
    %p30 = scmp.eq.s32.totalorder %s13, 3
    %p31 = por %p29, %p30
    %p32 = scmp.ne.s32.totalorder %s21, %s22
    %p33 = scmp.eq.s32.totalorder %s13, 0
    %p34 = por %p32, %p33
    %p35 = scmp.ne.s32.totalorder %s21, %s22
    %p36 = scmp.eq.s32.totalorder %s14, 3
    %p37 = por %p35, %p36
    %p39 = scmp.ne.s32.totalorder %s22, %s38
    %p40 = scmp.eq.s32.totalorder %s14, 0
    %p41 = por %p39, %p40
    %s43 = sadd.s32 %s42, 1
    %p46 = scmp.eq.s32.totalorder %s8, 3
    %p47 = scmp.ne.s32.totalorder %s42, %s44
    %p48 = scmp.eq.s32.totalorder %s8, 0
    %p49 = por %p47, %p48
    %p50 = scmp.ne.s32.totalorder %s42, %s44
    %p51 = scmp.eq.s32.totalorder %s13, 3
    %p52 = por %p50, %p51
    %p53 = scmp.ne.s32.totalorder %s44, %s45
    %p54 = scmp.eq.s32.totalorder %s13, 0
    %p55 = por %p53, %p54
    %p56 = scmp.ne.s32.totalorder %s44, %s45
    %p57 = scmp.eq.s32.totalorder %s14, 3
    %p58 = por %p56, %p57
    %p60 = scmp.ne.s32.totalorder %s45, %s59
    %p61 = scmp.eq.s32.totalorder %s14, 0
    %p62 = por %p60, %p61
    %s63 = ssub.s32 %s8, %s15
    %p64 = scmp.eq.s32.totalorder %s63, 0
    %s66 = sadd.s32 %s65, 1
    %s67 = scalar_select %p64, %s65, %s66
    %p70 = pneg %p64
    %p71 = scmp.eq.s32.totalorder %s8, 3
    %p72 = por %p70, %p71
    %p73 = scmp.ne.s32.totalorder %s65, %s68
    %p74 = scmp.eq.s32.totalorder %s8, 0
    %p75 = por %p73, %p74
    %p76 = scmp.ne.s32.totalorder %s65, %s68
    %p77 = scmp.eq.s32.totalorder %s13, 3
    %p78 = por %p76, %p77
    %p79 = scmp.ne.s32.totalorder %s68, %s69
    %p80 = scmp.eq.s32.totalorder %s13, 0
    %p81 = por %p79, %p80
    %p82 = scmp.ne.s32.totalorder %s68, %s69
    %p83 = scmp.eq.s32.totalorder %s14, 3
    %p84 = por %p82, %p83
    %p86 = scmp.ne.s32.totalorder %s69, %s85
    %p87 = scmp.eq.s32.totalorder %s14, 0
    %p88 = por %p86, %p87
    %p89 = scmp.le.s32.totalorder 1, %s8
    %p90 = scmp.lt.s32.totalorder %s8, 5
    %p91 = pnand %p89, %p90
    %p92 = pneg %p91
    // Predicated region
    $region9: #{interpolate_nearest.1} parent=5 // pred_check
      _
    $region10: #{interpolate_nearest.1} parent=5 // pred_check_branch
      %94 = sbr.rel (%p91) target = $region12
    $region11: #{interpolate_nearest.1} parent=5 // pred_region
      %s95 = ssub.s32 %s8, 1
      // Predicated region
      $region13: #{interpolate_nearest.1} parent=11 // pred_check
        %p96 = pneg %p55
      $region14: #{interpolate_nearest.1} parent=11 // pred_check_branch
        %98 = sbr.rel (%p96) target = $region16
      $region15: #{interpolate_nearest.1} parent=11 // pred_region
        _
      $region16: #{interpolate_nearest.1} parent=11 // pred_fallthru
        _
    $region12: #{interpolate_nearest.1} parent=5 // pred_fallthru
      _
    %p99 = scmp.lt.s32.totalorder %s8, 4
    // Predicated region
    $region17: #{interpolate_nearest.1} parent=5 // pred_check
      %p100 = pneg %p99
    $region18: #{interpolate_nearest.1} parent=5 // pred_check_branch
      %102 = sbr.rel (%p100) target = $region20
    $region19: #{interpolate_nearest.1} parent=5 // pred_region
      // Predicated region
      $region21: #{interpolate_nearest.1} parent=19 // pred_check
        %p103 = pneg %p28
      $region22: #{interpolate_nearest.1} parent=19 // pred_check_branch
        %105 = sbr.rel (%p103) target = $region24
      $region23: #{interpolate_nearest.1} parent=19 // pred_region
        %s106 = smul.u32 2, %s8
        %p107 = scmp.lt.s32.totalorder %s106, 7
        %s108 = scalar_select %p107, %s106, 7
        %s109 = smul.addr %s108, 8
        %s110 = scalar_lea.vmem %s0, %s109
        %s111 = smul.u32 2, %s8
      $region24: #{interpolate_nearest.1} parent=19 // pred_fallthru
        _
    $region20: #{interpolate_nearest.1} parent=5 // pred_fallthru
      _
    %p112 = scmp.le.s32.totalorder 1, %s8
    %p113 = scmp.lt.s32.totalorder %s8, 5
    %p114 = pnand %p112, %p113
    %p115 = pneg %p114
    // Predicated region
    $region25: #{interpolate_nearest.1} parent=5 // pred_check
      _
    $region26: #{interpolate_nearest.1} parent=5 // pred_check_branch
      %117 = sbr.rel (%p114) target = $region28
    $region27: #{interpolate_nearest.1} parent=5 // pred_region
      %s118 = ssub.s32 %s8, 1
      %s119 = smul.u32 2, %s13
      %p120 = scmp.lt.s32.totalorder %s119, 7
      %s121 = scalar_select %p120, %s119, 7
      %s122 = smul.addr %s121, 8
      %s123 = scalar_lea.vmem %s0, %s122
      %p124 = pneg %p34
      %p125 = pneg %p31
      %p126 = pneg %p55
      %p127 = pneg %p52
      %p128 = pneg %p81
      %p129 = pneg %p78
      %s130 = smul.u32 2, %s13
      %p131 = scmp.lt.s32.totalorder %s130, 7
      %s132 = scalar_select %p131, %s130, 7
      %s133 = smul.addr %s132, 8
      %s134 = scalar_lea.vmem %s2, %s133
      %s135 = smul.u32 2, %s13
      %p136 = scmp.lt.s32.totalorder %s135, 7
      %s137 = scalar_select %p136, %s135, 7
      %s138 = smul.addr %s137, 8
      %s139 = scalar_lea.vmem %s0, %s138
      %s140 = smul.u32 2, %s13
      %s141 = smul.u32 2, %s13
      %p142 = scmp.lt.s32.totalorder %s141, 7
      %s143 = scalar_select %p142, %s141, 7
      %s144 = smul.addr %s143, 8
      %s145 = scalar_lea.vmem %s2, %s144
      %s146 = smul.u32 2, %s13
      %v147 = vld [vmem:[%s139] sm:$0xff]
      %v148 = vld [vmem:[%s139 + $0x8] sm:$0xff]
      %v149 = vld [vmem:[%s1] sm:$0xff]
      %v150 = vld [vmem:[%s1 + $0x8] sm:$0xff]
      %v151 = vld [vmem:[%s1 + $0x10] sm:$0xff]
      %v152 = vld [vmem:[%s1 + $0x18] sm:$0xff]
      %vm153 = vcmask 261120
      %v155 = vsel %vm153, %v147, 0
      %v158 = vsel %vm153, %v148, 0
      %160 = vmatpush.msra.mxu0 0.0
      %161 = vmatpush.msra.mxu0 0.0
      %162 = vmatpush.msra.mxu0 0.0
      %163 = vmatpush.msra.mxu0 0.0
      %164 = vmatpush.msra.mxu0 0.0
      %165 = vmatpush.msra.mxu0 0.0
      %166 = vmatpush.msra.mxu0 0.0
      %167 = vmatpush.msra.mxu0 0.0
      %168 = vmatpush.msra.mxu0 0.0
      %169 = vmatpush.msra.mxu0 0.0
      %170 = vmatpush.msra.mxu0 0.0
      %171 = vmatpush.msra.mxu0 0.0
      %172 = vmatpush.msra.mxu0 %v152
      %173 = vmatpush.msra.mxu0 %v151
      %174 = vmatpush.msra.mxu0 %v150
      %175 = vmatpush.msra.mxu0 %v149
      %176 = vmatmul.f32.gmra.mxu0 %v155
      %v177 = vpop.f32.mrf.mxu0
      %v178 = vadd.f32 0.0, %v177
      %179 = vmatmul.f32.gmra.mxu0 %v158
      %v180 = vpop.f32.mrf.mxu0
      %v181 = vadd.f32 0.0, %v180
      %182 = vdwg.mxu0
      %183 = vst [vmem:[%s145] sm:$0xff] %v178
      %184 = vst [vmem:[%s145 + $0x8] sm:$0xff] %v181
      %s185 = smul.u32 2, %s13
      %p186 = scmp.lt.s32.totalorder %s185, 7
      %s187 = scalar_select %p186, %s185, 7
      %s188 = smul.addr %s187, 8
      %s189 = scalar_lea.vmem %s2, %s188
      // Predicated region
      $region29: #{interpolate_nearest.1} parent=27 // pred_check
        %p190 = pneg %p78
      $region30: #{interpolate_nearest.1} parent=27 // pred_check_branch
        %192 = sbr.rel (%p190) target = $region32
      $region31: #{interpolate_nearest.1} parent=27 // pred_region
        %s193 = smul.u32 2, %s13
      $region32: #{interpolate_nearest.1} parent=27 // pred_fallthru
        _
    $region28: #{interpolate_nearest.1} parent=5 // pred_fallthru
      _
    %p194 = scmp.le.s32.totalorder 2, %s8
    // Predicated region
    $region33: #{interpolate_nearest.1} parent=5 // pred_check
      %p195 = pneg %p194
    $region34: #{interpolate_nearest.1} parent=5 // pred_check_branch
      %197 = sbr.rel (%p195) target = $region36
    $region35: #{interpolate_nearest.1} parent=5 // pred_region
      %s198 = ssub.s32 %s8, 2
      // Predicated region
      $region37: #{interpolate_nearest.1} parent=35 // pred_check
        %p199 = pneg %p84
      $region38: #{interpolate_nearest.1} parent=35 // pred_check_branch
        %201 = sbr.rel (%p199) target = $region40
      $region39: #{interpolate_nearest.1} parent=35 // pred_region
        %s202 = smul.u32 2, %s14
        %p203 = scmp.lt.s32.totalorder %s202, 7
        %s204 = scalar_select %p203, %s202, 7
        %s205 = smul.addr %s204, 8
        %s206 = scalar_lea.vmem %s2, %s205
      $region40: #{interpolate_nearest.1} parent=35 // pred_fallthru
        _
    $region36: #{interpolate_nearest.1} parent=5 // pred_fallthru
      _
  $region6: #{interpolate_nearest.1} parent=0 // loop_footer
    %s12 = sadd.s32 1, %s8
  $region7: #{interpolate_nearest.1} parent=0 // loop_footer_branch
    %7 = sbr.rel target = $region3
  $region8: #{interpolate_nearest.1} parent=0 // loop_exit
    _

</llo_original>
